<compile_context>
chip_gen: v6e
topology: v6e:2x2x1
jax: 0.10.0
libtpu: 0.0.40
codegen_flags: <defaults>
</compile_context>

<pallas_src>
import functools

import jax
import jax.numpy as jnp
from jax.experimental import pallas as pl
from jax.experimental.pallas import tpu as pltpu


def set_aggregator_kernel(
    x_ref, q1_ref, wvs_ref, bvs_ref, mt_ref,
    wo_ref, bo_ref, wc_ref, bc_ref,
    prob_ref, emb_ref,
    *, set_size: int,
):
    r, d = x_ref.shape                     # r = TB * set_size rows, d feature lanes
    nh = mt_ref.shape[0]                   # num_heads
    tb = r // set_size                     # sets in this chunk

    x = x_ref[...]                                                        # (r, d)

    # Fused [V | head-scores] projection: one MXU weight push for the whole chunk.
    y = jnp.dot(x, wvs_ref[...], preferred_element_type=jnp.float32) + bvs_ref[...]  # (r, d+nh)
    v = y[:, :d]                                                          # (r, d)
    s = y[:, d:].reshape(tb, set_size, nh)                                # (tb, n, nh) logits

    # One softmax over the set axis for all heads and all sets in the chunk.
    m = jnp.max(s, axis=1, keepdims=True)                                 # (tb, 1, nh)
    e = jnp.exp(s - m)
    p = e * pl.reciprocal(jnp.sum(e, axis=1, keepdims=True), approx=True) # (tb, n, nh)

    # Expand head probs to per-lane weights via the constant (nh, d) indicator (single MXU op),
    # then one weighted sublane-group reduce over the set axis.
    pe = jnp.dot(p.reshape(r, nh), mt_ref[...], preferred_element_type=jnp.float32)   # (r, d)
    att = jnp.sum((pe * v).reshape(tb, set_size, d), axis=1)              # (tb, d)

    # Residual with the (hoisted) projected seed, then the rFF block of the MAB.
    o = q1_ref[...] + att                                                 # (tb, d)
    o = o + jax.nn.relu(
        jnp.dot(o, wo_ref[...], preferred_element_type=jnp.float32) + bo_ref[...])

    emb_ref[...] = o                                                      # mean of N identical rows == o
    # Classifier Linear(D, 1) + sigmoid: VPU mul + lane reduce; bias is an SMEM scalar.
    logit = jnp.sum(o * wc_ref[...], axis=-1, keepdims=True) + bc_ref[0]  # (tb, 1)
    prob_ref[...] = jax.nn.sigmoid(logit)


def _derive_folded_params(params, num_heads):
    """Input-independent algebra hoisted out of the kernel (cache across calls if desired)."""
    d = params["Wq"].shape[0]
    dh = d // num_heads
    scale = 1.0 / jnp.sqrt(jnp.float32(d))            # Set-Transformer scales by sqrt(dim_V)

    q1 = params["S"] @ params["Wq"] + params["bq"]    # (1, d) projected seed (constant query row)

    # Fold q1, the 1/sqrt(D) scale and the per-head lane sum into the K projection:
    #   scores[:, h] = X @ Ws[:, h] + bs[h]
    wk_scaled = params["Wk"] * (q1 * scale)                              # column-scaled (d, d)
    ws = wk_scaled.reshape(d, num_heads, dh).sum(axis=-1)                # (d, nh)
    bs = (params["bk"] * (q1 * scale)).reshape(1, num_heads, dh).sum(axis=-1)  # (1, nh)

    # Fuse with the V projection: one (d, d+nh) weight, one (1, d+nh) bias.
    wvs = jnp.concatenate([params["Wv"], ws], axis=1)
    bvs = jnp.concatenate([params["bv"], bs], axis=1)

    # Head-expansion indicator: Mt[h, d'] = 1 iff lane d' belongs to head h.
    mt = (jnp.arange(d)[None, :] // dh == jnp.arange(num_heads)[:, None]).astype(jnp.float32)
    return q1, wvs, bvs, mt


def set_aggregator_forward(params, X, *, num_heads, sets_per_chunk=512):
    """X: (B, N, D) batch of independent vertex sets. Returns (prob (B,), emb (B, D))."""
    B, n, d = X.shape
    q1, wvs, bvs, mt = _derive_folded_params(params, num_heads)

    # Chunk the batch: one grid step handles TB sets (one big matmul, one output slab).
    if B <= sets_per_chunk:
        tb, num_chunks = B, 1
    else:
        tb = sets_per_chunk                 # keep a multiple of 8 for sublane-aligned blocks
        num_chunks = (B + tb - 1) // tb
    bp = num_chunks * tb
    if bp != B:
        X = jnp.pad(X, ((0, bp - B), (0, 0), (0, 0)))
    x_flat = X.reshape(bp * n, d)

    def fixed(shape):
        # Whole-array block, same block index every step => weights stay resident in VMEM.
        return pl.BlockSpec(shape, lambda c: (0, 0))

    kernel = functools.partial(set_aggregator_kernel, set_size=n)

    prob, emb = pl.pallas_call(
        kernel,
        grid=(num_chunks,),
        out_shape=(
            jax.ShapeDtypeStruct((bp, 1), jnp.float32),
            jax.ShapeDtypeStruct((bp, d), jnp.float32),
        ),
        in_specs=[
            pl.BlockSpec((tb * n, d), lambda c: (c, 0)),        # X chunk (TB*N rows)
            fixed((1, d)),                                      # q1 (hoisted projected seed)
            fixed((d, d + num_heads)),                          # [Wv | Ws]
            fixed((1, d + num_heads)),                          # [bv | bs]
            fixed((num_heads, d)),                              # head indicator Mt
            fixed((d, d)), fixed((1, d)),                       # Wo, bo
            fixed((1, d)),                                      # Wc row
            pl.BlockSpec(memory_space=pltpu.MemorySpace.SMEM),  # bc scalar in SMEM
        ],
        out_specs=(
            pl.BlockSpec((tb, 1), lambda c: (c, 0)),            # prob chunk
            pl.BlockSpec((tb, d), lambda c: (c, 0)),            # emb chunk (lane-dense slab)
        ),
        compiler_params=pltpu.CompilerParams(
            dimension_semantics=("parallel",)),                 # v7x: chunks split over 2 TCs
    )(
        x_flat, q1, wvs, bvs, mt,
        params["Wo"], params["bo"], params["Wc"], params["bc"].reshape(1),
    )
    return prob[:B, 0], emb[:B]


def init_params(key, dim_vertex, num_seeds=1):
    ks = jax.random.split(key, 7)
    d = dim_vertex

    def xavier(k, fan_in, fan_out, shape):
        bound = jnp.sqrt(6.0 / (fan_in + fan_out))
        return jax.random.uniform(k, shape, jnp.float32, -bound, bound)

    # Weights are stored transposed relative to torch.nn.Linear (so y = x @ W + b).
    return {
        "S":  xavier(ks[0], num_seeds, d, (num_seeds, d)),
        "Wq": xavier(ks[1], d, d, (d, d)), "bq": jnp.zeros((1, d), jnp.float32),
        "Wk": xavier(ks[2], d, d, (d, d)), "bk": jnp.zeros((1, d), jnp.float32),
        "Wv": xavier(ks[3], d, d, (d, d)), "bv": jnp.zeros((1, d), jnp.float32),
        "Wo": xavier(ks[4], d, d, (d, d)), "bo": jnp.zeros((1, d), jnp.float32),
        "Wc": xavier(ks[5], d, 1, (1, d)), "bc": jnp.zeros((1, 1), jnp.float32),
    }


def set_aggregator_reference(params, X, *, num_heads):
    """Pure-JAX reference of the ORIGINAL repeat-N formulation (one set X: (N, D))."""
    n, d = X.shape
    s_rep = jnp.broadcast_to(params["S"], (n, d))
    q = s_rep @ params["Wq"] + params["bq"]
    k = X @ params["Wk"] + params["bk"]
    v = X @ params["Wv"] + params["bv"]
    dh = d // num_heads
    outs = []
    for h in range(num_heads):
        sl = slice(h * dh, (h + 1) * dh)
        scores = (q[:, sl] @ k[:, sl].T) / jnp.sqrt(jnp.float32(d))
        p = jax.nn.softmax(scores, axis=-1)
        outs.append(p @ v[:, sl])
    o = q + jnp.concatenate(outs, axis=-1)
    o = o + jax.nn.relu(o @ params["Wo"] + params["bo"])
    emb = jnp.mean(o, axis=0)                                   # (D,)
    logit = jnp.sum(emb * params["Wc"][0]) + params["bc"][0, 0]
    return jax.nn.sigmoid(logit), emb


if __name__ == "__main__":
    key = jax.random.PRNGKey(0)
    k_param, k_x = jax.random.split(key)

    dim_vertex = 32     # hidden
    num_heads = 4
    n_vertices = 8      # set size
    batch = 16          # independent sets
    sets_per_chunk = 8  # small here to exercise the multi-chunk (2-step, parallel) path

    params = init_params(k_param, dim_vertex, num_seeds=1)
    X = jax.random.normal(k_x, (batch, n_vertices, dim_vertex), jnp.float32)

    fwd = jax.jit(functools.partial(
        set_aggregator_forward, num_heads=num_heads, sets_per_chunk=sets_per_chunk))
    prob, embedding = fwd(params, X)
    jax.block_until_ready((prob, embedding))

    assert prob.shape == (batch,)
    assert embedding.shape == (batch, dim_vertex)

    # Validate the folded / chunk-batched kernel against the repeat-N reference.
    ref_p, ref_e = [], []
    for b in range(batch):
        p_b, e_b = set_aggregator_reference(params, X[b], num_heads=num_heads)
        ref_p.append(p_b)
        ref_e.append(e_b)
    ref_p = jnp.stack(ref_p)
    ref_e = jnp.stack(ref_e)
    assert jnp.allclose(prob, ref_p, rtol=2e-3, atol=2e-3)
    assert jnp.allclose(embedding, ref_e, rtol=2e-3, atol=2e-3)

    print("KERNEL_OK")
</pallas_src>

<mosaic_0001>
module attributes {stable_mosaic.version = 11 : i64} {
  func.func @set_aggregator_kernel(%arg0: i32, %arg1: memref<64x32xf32, #tpu.memory_space<vmem>>, %arg2: memref<1x32xf32, #tpu.memory_space<vmem>>, %arg3: memref<32x36xf32, #tpu.memory_space<vmem>>, %arg4: memref<1x36xf32, #tpu.memory_space<vmem>>, %arg5: memref<4x32xf32, #tpu.memory_space<vmem>>, %arg6: memref<32x32xf32, #tpu.memory_space<vmem>>, %arg7: memref<1x32xf32, #tpu.memory_space<vmem>>, %arg8: memref<1x32xf32, #tpu.memory_space<vmem>>, %arg9: memref<1xf32, #tpu.memory_space<smem>>, %arg10: memref<8x1xf32, #tpu.memory_space<vmem>>, %arg11: memref<8x32xf32, #tpu.memory_space<vmem>>) attributes {dimension_semantics = [#tpu.dimension_semantics<parallel>], iteration_bounds = array<i64: 2>, scalar_prefetch = 0 : i64, scratch_operands = 0 : i64, tpu.core_type = #tpu.core_type<tc>, window_params = [{transform_indices = @transform_0, window_bounds = array<i64: 64, 32>}, {pipeline_mode = #tpu.pipeline_mode<synchronous>, transform_indices = @transform_1, window_bounds = array<i64: 1, 32>}, {pipeline_mode = #tpu.pipeline_mode<synchronous>, transform_indices = @transform_2, window_bounds = array<i64: 32, 36>}, {pipeline_mode = #tpu.pipeline_mode<synchronous>, transform_indices = @transform_3, window_bounds = array<i64: 1, 36>}, {pipeline_mode = #tpu.pipeline_mode<synchronous>, transform_indices = @transform_4, window_bounds = array<i64: 4, 32>}, {pipeline_mode = #tpu.pipeline_mode<synchronous>, transform_indices = @transform_5, window_bounds = array<i64: 32, 32>}, {pipeline_mode = #tpu.pipeline_mode<synchronous>, transform_indices = @transform_6, window_bounds = array<i64: 1, 32>}, {pipeline_mode = #tpu.pipeline_mode<synchronous>, transform_indices = @transform_7, window_bounds = array<i64: 1, 32>}, {transform_indices = @transform_8, window_bounds = array<i64: 1>}, {transform_indices = @transform_9, window_bounds = array<i64: 8, 1>}, {transform_indices = @transform_10, window_bounds = array<i64: 8, 32>}]} {
    %c0 = arith.constant 0 : index
    %c0_0 = arith.constant 0 : index
    %0 = vector.load %arg1[%c0, %c0_0] : memref<64x32xf32, #tpu.memory_space<vmem>>, vector<64x32xf32>
    %c0_1 = arith.constant 0 : index
    %c0_2 = arith.constant 0 : index
    %1 = vector.load %arg3[%c0_1, %c0_2] : memref<32x36xf32, #tpu.memory_space<vmem>>, vector<32x36xf32>
    %cst = arith.constant dense<0.000000e+00> : vector<64x36xf32>
    %2 = tpu.matmul %0, %1, %cst {dimension_numbers = #tpu.dot_dimension_numbers<[1], [0], [0], [1], [0, 0, 1, 1], [], []>} : vector<64x32xf32>, vector<32x36xf32>, vector<64x36xf32> -> vector<64x36xf32>
    %c0_3 = arith.constant 0 : index
    %c0_4 = arith.constant 0 : index
    %3 = vector.load %arg4[%c0_3, %c0_4] : memref<1x36xf32, #tpu.memory_space<vmem>>, vector<1x36xf32>
    %4 = vector.broadcast %3 : vector<1x36xf32> to vector<64x36xf32>
    %5 = arith.addf %2, %4 : vector<64x36xf32>
    %6 = vector.extract_strided_slice %5 {offsets = [0, 0], sizes = [64, 32], strides = [1, 1]} : vector<64x36xf32> to vector<64x32xf32>
    %7 = vector.extract_strided_slice %5 {offsets = [0, 32], sizes = [64, 4], strides = [1, 1]} : vector<64x36xf32> to vector<64x4xf32>
    %8 = vector.shape_cast %7 : vector<64x4xf32> to vector<8x8x4xf32>
    %cst_5 = arith.constant dense<0xFF800000> : vector<8x4xf32>
    %9 = vector.multi_reduction <maximumf>, %8, %cst_5 [1] : vector<8x8x4xf32> to vector<8x4xf32>
    %10 = vector.shape_cast %9 : vector<8x4xf32> to vector<8x1x4xf32>
    %11 = vector.broadcast %10 : vector<8x1x4xf32> to vector<8x8x4xf32>
    %12 = arith.subf %8, %11 : vector<8x8x4xf32>
    %13 = math.exp %12 : vector<8x8x4xf32>
    %cst_6 = arith.constant dense<0.000000e+00> : vector<8x4xf32>
    %14 = vector.multi_reduction <add>, %13, %cst_6 [1] : vector<8x8x4xf32> to vector<8x4xf32>
    %15 = vector.shape_cast %14 : vector<8x4xf32> to vector<8x1x4xf32>
    %16 = tpu.reciprocal %15 {approx = true} : vector<8x1x4xf32> -> vector<8x1x4xf32>
    %17 = vector.broadcast %16 : vector<8x1x4xf32> to vector<8x8x4xf32>
    %18 = arith.mulf %13, %17 : vector<8x8x4xf32>
    %19 = vector.shape_cast %18 : vector<8x8x4xf32> to vector<64x4xf32>
    %c0_7 = arith.constant 0 : index
    %c0_8 = arith.constant 0 : index
    %20 = vector.load %arg5[%c0_7, %c0_8] : memref<4x32xf32, #tpu.memory_space<vmem>>, vector<4x32xf32>
    %cst_9 = arith.constant dense<0.000000e+00> : vector<64x32xf32>
    %21 = tpu.matmul %19, %20, %cst_9 {dimension_numbers = #tpu.dot_dimension_numbers<[1], [0], [0], [1], [0, 0, 1, 1], [], []>} : vector<64x4xf32>, vector<4x32xf32>, vector<64x32xf32> -> vector<64x32xf32>
    %22 = arith.mulf %21, %6 : vector<64x32xf32>
    %23 = vector.shape_cast %22 : vector<64x32xf32> to vector<8x8x32xf32>
    %cst_10 = arith.constant dense<0.000000e+00> : vector<8x32xf32>
    %24 = vector.multi_reduction <add>, %23, %cst_10 [1] : vector<8x8x32xf32> to vector<8x32xf32>
    %c0_11 = arith.constant 0 : index
    %c0_12 = arith.constant 0 : index
    %25 = vector.load %arg2[%c0_11, %c0_12] : memref<1x32xf32, #tpu.memory_space<vmem>>, vector<1x32xf32>
    %26 = vector.broadcast %25 : vector<1x32xf32> to vector<8x32xf32>
    %27 = arith.addf %26, %24 : vector<8x32xf32>
    %c0_13 = arith.constant 0 : index
    %c0_14 = arith.constant 0 : index
    %28 = vector.load %arg6[%c0_13, %c0_14] : memref<32x32xf32, #tpu.memory_space<vmem>>, vector<32x32xf32>
    %cst_15 = arith.constant dense<0.000000e+00> : vector<8x32xf32>
    %29 = tpu.matmul %27, %28, %cst_15 {dimension_numbers = #tpu.dot_dimension_numbers<[1], [0], [0], [1], [0, 0, 1, 1], [], []>} : vector<8x32xf32>, vector<32x32xf32>, vector<8x32xf32> -> vector<8x32xf32>
    %c0_16 = arith.constant 0 : index
    %c0_17 = arith.constant 0 : index
    %30 = vector.load %arg7[%c0_16, %c0_17] : memref<1x32xf32, #tpu.memory_space<vmem>>, vector<1x32xf32>
    %31 = vector.broadcast %30 : vector<1x32xf32> to vector<8x32xf32>
    %32 = arith.addf %29, %31 : vector<8x32xf32>
    %cst_18 = arith.constant 0.000000e+00 : f32
    %33 = vector.broadcast %cst_18 : f32 to vector<8x32xf32>
    %34 = arith.maximumf %32, %33 : vector<8x32xf32>
    %35 = arith.addf %27, %34 : vector<8x32xf32>
    %c0_19 = arith.constant 0 : index
    %c0_20 = arith.constant 0 : index
    %36 = vector.load %arg11[%c0_19, %c0_20] : memref<8x32xf32, #tpu.memory_space<vmem>>, vector<8x32xf32>
    tpu.vector_store %arg11[%c0_19, %c0_20], %35 {strides = array<i32>} : memref<8x32xf32, #tpu.memory_space<vmem>>, vector<8x32xf32>,
    %c0_21 = arith.constant 0 : index
    %c0_22 = arith.constant 0 : index
    %37 = vector.load %arg8[%c0_21, %c0_22] : memref<1x32xf32, #tpu.memory_space<vmem>>, vector<1x32xf32>
    %38 = vector.broadcast %37 : vector<1x32xf32> to vector<8x32xf32>
    %39 = arith.mulf %35, %38 : vector<8x32xf32>
    %cst_23 = arith.constant dense<0.000000e+00> : vector<8xf32>
    %40 = vector.multi_reduction <add>, %39, %cst_23 [1] : vector<8x32xf32> to vector<8xf32>
    %41 = vector.shape_cast %40 : vector<8xf32> to vector<8x1xf32>
    %c0_24 = arith.constant 0 : index
    %42 = memref.load %arg9[%c0_24] : memref<1xf32, #tpu.memory_space<smem>>
    %43 = vector.broadcast %42 : f32 to vector<8x1xf32>
    %44 = arith.addf %41, %43 : vector<8x1xf32>
    %45 = arith.negf %44 : vector<8x1xf32>
    %46 = math.exp %45 : vector<8x1xf32>
    %cst_25 = arith.constant 1.000000e+00 : f32
    %47 = vector.broadcast %cst_25 : f32 to vector<8x1xf32>
    %48 = arith.addf %47, %46 : vector<8x1xf32>
    %49 = arith.divf %47, %48 : vector<8x1xf32>
    %c0_26 = arith.constant 0 : index
    %c0_27 = arith.constant 0 : index
    %50 = vector.load %arg10[%c0_26, %c0_27] : memref<8x1xf32, #tpu.memory_space<vmem>>, vector<8x1xf32>
    tpu.vector_store %arg10[%c0_26, %c0_27], %49 {strides = array<i32>} : memref<8x1xf32, #tpu.memory_space<vmem>>, vector<8x1xf32>,
    return
  }
  func.func @transform_0(%arg0: i32) -> (i32, i32) {
    %c0_i32 = arith.constant 0 : i32
    %c0_i32_0 = arith.constant 0 : i32
    return %arg0, %c0_i32 : i32, i32
  }
  func.func @transform_1(%arg0: i32) -> (i32, i32) {
    %c0_i32 = arith.constant 0 : i32
    %c0_i32_0 = arith.constant 0 : i32
    %c0_i32_1 = arith.constant 0 : i32
    return %c0_i32, %c0_i32_0 : i32, i32
  }
  func.func @transform_2(%arg0: i32) -> (i32, i32) {
    %c0_i32 = arith.constant 0 : i32
    %c0_i32_0 = arith.constant 0 : i32
    %c0_i32_1 = arith.constant 0 : i32
    return %c0_i32, %c0_i32_0 : i32, i32
  }
  func.func @transform_3(%arg0: i32) -> (i32, i32) {
    %c0_i32 = arith.constant 0 : i32
    %c0_i32_0 = arith.constant 0 : i32
    %c0_i32_1 = arith.constant 0 : i32
    return %c0_i32, %c0_i32_0 : i32, i32
  }
  func.func @transform_4(%arg0: i32) -> (i32, i32) {
    %c0_i32 = arith.constant 0 : i32
    %c0_i32_0 = arith.constant 0 : i32
    %c0_i32_1 = arith.constant 0 : i32
    return %c0_i32, %c0_i32_0 : i32, i32
  }
  func.func @transform_5(%arg0: i32) -> (i32, i32) {
    %c0_i32 = arith.constant 0 : i32
    %c0_i32_0 = arith.constant 0 : i32
    %c0_i32_1 = arith.constant 0 : i32
    return %c0_i32, %c0_i32_0 : i32, i32
  }
  func.func @transform_6(%arg0: i32) -> (i32, i32) {
    %c0_i32 = arith.constant 0 : i32
    %c0_i32_0 = arith.constant 0 : i32
    %c0_i32_1 = arith.constant 0 : i32
    return %c0_i32, %c0_i32_0 : i32, i32
  }
  func.func @transform_7(%arg0: i32) -> (i32, i32) {
    %c0_i32 = arith.constant 0 : i32
    %c0_i32_0 = arith.constant 0 : i32
    %c0_i32_1 = arith.constant 0 : i32
    return %c0_i32, %c0_i32_0 : i32, i32
  }
  func.func @transform_8(%arg0: i32) -> i32 {
    %c0_i32 = arith.constant 0 : i32
    %c0_i32_0 = arith.constant 0 : i32
    return %c0_i32 : i32
  }
  func.func @transform_9(%arg0: i32) -> (i32, i32) {
    %c0_i32 = arith.constant 0 : i32
    %c0_i32_0 = arith.constant 0 : i32
    return %arg0, %c0_i32 : i32, i32
  }
  func.func @transform_10(%arg0: i32) -> (i32, i32) {
    %c0_i32 = arith.constant 0 : i32
    %c0_i32_0 = arith.constant 0 : i32
    return %arg0, %c0_i32 : i32, i32
  }
}

</mosaic_0001>

<llo_original>
// kernel: set_aggregator_forward.1
$region0: #{set_aggregator_forward.1}
  #allocation0 [shape = 'u32[]', space=smem, size = 0x4, offset = 0x4, fixed_abs, tag = 'smem constant byte address 0x4 - core index']
  #allocation1 [shape = 'u32[144,128]{1,0:T(1,128)}', space=vmem, size = 0x12000, scoped, tag = 'internal scratch']
  #allocation2 [shape = 'f32[1]{0:T(128)S(6)}', space=smem, size = 0x200, scoped, tag = 'scoped memory for set_aggregator_forward.1']
  %s0 = inlined_call_operand.vmem [shape: f32[128,32], index: 0, kind: input, shape index: {}]
  %s1 = inlined_call_operand.vmem [shape: f32[1,32], index: 1, kind: input, shape index: {}]
  %s2 = inlined_call_operand.vmem [shape: f32[32,36], index: 2, kind: input, shape index: {}]
  %s3 = inlined_call_operand.vmem [shape: f32[1,36], index: 3, kind: input, shape index: {}]
  %s4 = inlined_call_operand.vmem [shape: f32[4,32], index: 4, kind: input, shape index: {}]
  %s5 = inlined_call_operand.vmem [shape: f32[32,32], index: 5, kind: input, shape index: {}]
  %s6 = inlined_call_operand.vmem [shape: f32[1,32], index: 6, kind: input, shape index: {}]
  %s7 = inlined_call_operand.vmem [shape: f32[1,32], index: 7, kind: input, shape index: {}]
  %s8 = inlined_call_operand.<no memory space> [shape: f32[1], index: 8, kind: input, shape index: {}]
  %s9 = inlined_call_operand.vmem [shape: f32[16,1], index: 9, kind: output, shape index: {0}]
  %s10 = inlined_call_operand.hbm [shape: f32[16,32], index: 10, kind: output, shape index: {1}]
  %11 = xla_tuple %s9, %s10
  %s12 = sld [smem:[#allocation0]]
  $region77: #{set_aggregator_forward.1} parent=0
    _
  %s14 = ssub.s32 1, %s12
  %s15 = scalar_select 0, %s14, %s12
  %16 = sst [smem:[#allocation2]] %s8
  $region1: #{set_aggregator_forward.1} parent=0
    #allocation3 [shape = 'u8[8192]{0}', space=vmem, size = 0x2000, scoped, tag = 'output window, operand 1']
    #allocation4 [shape = 's32[2]{0}', space=sflag, size = 0x8, scoped, tag = 'scoped memory for set_aggregator_forward.1']
    %17 = vsyncpa [#allocation4], 0
    %s18 = scalar_lea.sflag [#allocation4], 1
    %19 = vsyncpa %s18, 0
    loop: start=0, step=1, limit=4
    $region2: #{set_aggregator_forward.1} parent=1 // loop_pre_header
      _
    $region3: #{set_aggregator_forward.1} parent=1 // loop_header
      %s21 = sphi 0, %s25
      %p22 = scmp.ge.s32.totalorder %s21, 4
      %s31 = sphi 0, %s33
      %s34 = sphi 0, %s31
      %s35 = sphi 0, %s34
      %s51 = sphi 0, %s35
      %s55 = sphi 0, %s55
      %s57 = sphi 0, %s55
      %s58 = sphi 0, %s57
      %s72 = sphi 0, %s58
      %s76 = sphi 0, %s76
      %s78 = sphi 0, %s76
      %s79 = sphi 0, %s78
      %s93 = sphi 0, %s79
      %s97 = sphi 0, %s97
      %s99 = sphi 0, %s97
      %s100 = sphi 0, %s99
      %s114 = sphi 0, %s100
      %s118 = sphi 0, %s118
      %s120 = sphi 0, %s118
      %s121 = sphi 0, %s120
      %s135 = sphi 0, %s121
      %s139 = sphi 0, %s139
      %s141 = sphi 0, %s139
      %s142 = sphi 0, %s141
      %s156 = sphi 0, %s142
      %s160 = sphi 0, %s160
      %s162 = sphi 0, %s160
      %s163 = sphi 0, %s162
      %s177 = sphi 0, %s163
      %s181 = sphi 0, %s181
      %s183 = sphi 0, %s181
      %s184 = sphi 0, %s183
      %s198 = sphi 0, %s184
      %s202 = sphi 0, %s202
      %s204 = sphi 0, %s202
      %s205 = sphi 0, %s204
      %s219 = sphi 0, %s205
      %s225 = sphi 0, %s227
      %s228 = sphi 0, %s225
      %s229 = sphi 0, %s228
      %s245 = sphi 0, %s229
      %s251 = sphi 0, %s253
      %s254 = sphi 0, %s251
      %s255 = sphi 0, %s254
      %s271 = sphi 0, %s255
    $region4: #{set_aggregator_forward.1} parent=1 // loop_header_branch
      %24 = sbr.rel (%p22) target = $region8
    $region5: #{set_aggregator_forward.1} parent=1 // loop_body
      %s26 = ssub.s32 %s21, 1
      %s27 = ssub.s32 %s21, 2
      %s28 = sadd.s32 %s21, 1
      %s29 = ssub.s32 %s21, %s28
      %p30 = scmp.eq.s32.totalorder %s29, 0
      %s32 = sadd.s32 %s31, 1
      %s33 = scalar_select %p30, %s31, %s32
      %p36 = pneg %p30
      %p37 = scmp.eq.s32.totalorder %s21, 1
      %p38 = por %p36, %p37
      %p39 = scmp.ne.s32.totalorder %s31, %s34
      %p40 = scmp.eq.s32.totalorder %s21, 0
      %p41 = por %p39, %p40
      %p42 = scmp.ne.s32.totalorder %s31, %s34
      %p43 = scmp.eq.s32.totalorder %s26, 1
      %p44 = por %p42, %p43
      %p45 = scmp.ne.s32.totalorder %s34, %s35
      %p46 = scmp.eq.s32.totalorder %s26, 0
      %p47 = por %p45, %p46
      %p48 = scmp.ne.s32.totalorder %s34, %s35
      %p49 = scmp.eq.s32.totalorder %s27, 1
      %p50 = por %p48, %p49
      %p52 = scmp.ne.s32.totalorder %s35, %s51
      %p53 = scmp.eq.s32.totalorder %s27, 0
      %p54 = por %p52, %p53
      %s56 = sadd.s32 %s55, 1
      %p59 = scmp.eq.s32.totalorder %s21, 1
      %p60 = scmp.ne.s32.totalorder %s55, %s57
      %p61 = scmp.eq.s32.totalorder %s21, 0
      %p62 = por %p60, %p61
      %p63 = scmp.ne.s32.totalorder %s55, %s57
      %p64 = scmp.eq.s32.totalorder %s26, 1
      %p65 = por %p63, %p64
      %p66 = scmp.ne.s32.totalorder %s57, %s58
      %p67 = scmp.eq.s32.totalorder %s26, 0
      %p68 = por %p66, %p67
      %p69 = scmp.ne.s32.totalorder %s57, %s58
      %p70 = scmp.eq.s32.totalorder %s27, 1
      %p71 = por %p69, %p70
      %p73 = scmp.ne.s32.totalorder %s58, %s72
      %p74 = scmp.eq.s32.totalorder %s27, 0
      %p75 = por %p73, %p74
      %s77 = sadd.s32 %s76, 1
      %p80 = scmp.eq.s32.totalorder %s21, 1
      %p81 = scmp.ne.s32.totalorder %s76, %s78
      %p82 = scmp.eq.s32.totalorder %s21, 0
      %p83 = por %p81, %p82
      %p84 = scmp.ne.s32.totalorder %s76, %s78
      %p85 = scmp.eq.s32.totalorder %s26, 1
      %p86 = por %p84, %p85
      %p87 = scmp.ne.s32.totalorder %s78, %s79
      %p88 = scmp.eq.s32.totalorder %s26, 0
      %p89 = por %p87, %p88
      %p90 = scmp.ne.s32.totalorder %s78, %s79
      %p91 = scmp.eq.s32.totalorder %s27, 1
      %p92 = por %p90, %p91
      %p94 = scmp.ne.s32.totalorder %s79, %s93
      %p95 = scmp.eq.s32.totalorder %s27, 0
      %p96 = por %p94, %p95
      %s98 = sadd.s32 %s97, 1
      %p101 = scmp.eq.s32.totalorder %s21, 1
      %p102 = scmp.ne.s32.totalorder %s97, %s99
      %p103 = scmp.eq.s32.totalorder %s21, 0
      %p104 = por %p102, %p103
      %p105 = scmp.ne.s32.totalorder %s97, %s99
      %p106 = scmp.eq.s32.totalorder %s26, 1
      %p107 = por %p105, %p106
      %p108 = scmp.ne.s32.totalorder %s99, %s100
      %p109 = scmp.eq.s32.totalorder %s26, 0
      %p110 = por %p108, %p109
      %p111 = scmp.ne.s32.totalorder %s99, %s100
      %p112 = scmp.eq.s32.totalorder %s27, 1
      %p113 = por %p111, %p112
      %p115 = scmp.ne.s32.totalorder %s100, %s114
      %p116 = scmp.eq.s32.totalorder %s27, 0
      %p117 = por %p115, %p116
      %s119 = sadd.s32 %s118, 1
      %p122 = scmp.eq.s32.totalorder %s21, 1
      %p123 = scmp.ne.s32.totalorder %s118, %s120
      %p124 = scmp.eq.s32.totalorder %s21, 0
      %p125 = por %p123, %p124
      %p126 = scmp.ne.s32.totalorder %s118, %s120
      %p127 = scmp.eq.s32.totalorder %s26, 1
      %p128 = por %p126, %p127
      %p129 = scmp.ne.s32.totalorder %s120, %s121
      %p130 = scmp.eq.s32.totalorder %s26, 0
      %p131 = por %p129, %p130
      %p132 = scmp.ne.s32.totalorder %s120, %s121
      %p133 = scmp.eq.s32.totalorder %s27, 1
      %p134 = por %p132, %p133
      %p136 = scmp.ne.s32.totalorder %s121, %s135
      %p137 = scmp.eq.s32.totalorder %s27, 0
      %p138 = por %p136, %p137
      %s140 = sadd.s32 %s139, 1
      %p143 = scmp.eq.s32.totalorder %s21, 1
      %p144 = scmp.ne.s32.totalorder %s139, %s141
      %p145 = scmp.eq.s32.totalorder %s21, 0
      %p146 = por %p144, %p145
      %p147 = scmp.ne.s32.totalorder %s139, %s141
      %p148 = scmp.eq.s32.totalorder %s26, 1
      %p149 = por %p147, %p148
      %p150 = scmp.ne.s32.totalorder %s141, %s142
      %p151 = scmp.eq.s32.totalorder %s26, 0
      %p152 = por %p150, %p151
      %p153 = scmp.ne.s32.totalorder %s141, %s142
      %p154 = scmp.eq.s32.totalorder %s27, 1
      %p155 = por %p153, %p154
      %p157 = scmp.ne.s32.totalorder %s142, %s156
      %p158 = scmp.eq.s32.totalorder %s27, 0
      %p159 = por %p157, %p158
      %s161 = sadd.s32 %s160, 1
      %p164 = scmp.eq.s32.totalorder %s21, 1
      %p165 = scmp.ne.s32.totalorder %s160, %s162
      %p166 = scmp.eq.s32.totalorder %s21, 0
      %p167 = por %p165, %p166
      %p168 = scmp.ne.s32.totalorder %s160, %s162
      %p169 = scmp.eq.s32.totalorder %s26, 1
      %p170 = por %p168, %p169
      %p171 = scmp.ne.s32.totalorder %s162, %s163
      %p172 = scmp.eq.s32.totalorder %s26, 0
      %p173 = por %p171, %p172
      %p174 = scmp.ne.s32.totalorder %s162, %s163
      %p175 = scmp.eq.s32.totalorder %s27, 1
      %p176 = por %p174, %p175
      %p178 = scmp.ne.s32.totalorder %s163, %s177
      %p179 = scmp.eq.s32.totalorder %s27, 0
      %p180 = por %p178, %p179
      %s182 = sadd.s32 %s181, 1
      %p185 = scmp.eq.s32.totalorder %s21, 1
      %p186 = scmp.ne.s32.totalorder %s181, %s183
      %p187 = scmp.eq.s32.totalorder %s21, 0
      %p188 = por %p186, %p187
      %p189 = scmp.ne.s32.totalorder %s181, %s183
      %p190 = scmp.eq.s32.totalorder %s26, 1
      %p191 = por %p189, %p190
      %p192 = scmp.ne.s32.totalorder %s183, %s184
      %p193 = scmp.eq.s32.totalorder %s26, 0
      %p194 = por %p192, %p193
      %p195 = scmp.ne.s32.totalorder %s183, %s184
      %p196 = scmp.eq.s32.totalorder %s27, 1
      %p197 = por %p195, %p196
      %p199 = scmp.ne.s32.totalorder %s184, %s198
      %p200 = scmp.eq.s32.totalorder %s27, 0
      %p201 = por %p199, %p200
      %s203 = sadd.s32 %s202, 1
      %p206 = scmp.eq.s32.totalorder %s21, 1
      %p207 = scmp.ne.s32.totalorder %s202, %s204
      %p208 = scmp.eq.s32.totalorder %s21, 0
      %p209 = por %p207, %p208
      %p210 = scmp.ne.s32.totalorder %s202, %s204
      %p211 = scmp.eq.s32.totalorder %s26, 1
      %p212 = por %p210, %p211
      %p213 = scmp.ne.s32.totalorder %s204, %s205
      %p214 = scmp.eq.s32.totalorder %s26, 0
      %p215 = por %p213, %p214
      %p216 = scmp.ne.s32.totalorder %s204, %s205
      %p217 = scmp.eq.s32.totalorder %s27, 1
      %p218 = por %p216, %p217
      %p220 = scmp.ne.s32.totalorder %s205, %s219
      %p221 = scmp.eq.s32.totalorder %s27, 0
      %p222 = por %p220, %p221
      %s223 = ssub.s32 %s21, %s28
      %p224 = scmp.eq.s32.totalorder %s223, 0
      %s226 = sadd.s32 %s225, 1
      %s227 = scalar_select %p224, %s225, %s226
      %p230 = pneg %p224
      %p231 = scmp.eq.s32.totalorder %s21, 1
      %p232 = por %p230, %p231
      %p233 = scmp.ne.s32.totalorder %s225, %s228
      %p234 = scmp.eq.s32.totalorder %s21, 0
      %p235 = por %p233, %p234
      %p236 = scmp.ne.s32.totalorder %s225, %s228
      %p237 = scmp.eq.s32.totalorder %s26, 1
      %p238 = por %p236, %p237
      %p239 = scmp.ne.s32.totalorder %s228, %s229
      %p240 = scmp.eq.s32.totalorder %s26, 0
      %p241 = por %p239, %p240
      %p242 = scmp.ne.s32.totalorder %s228, %s229
      %p243 = scmp.eq.s32.totalorder %s27, 1
      %p244 = por %p242, %p243
      %p246 = scmp.ne.s32.totalorder %s229, %s245
      %p247 = scmp.eq.s32.totalorder %s27, 0
      %p248 = por %p246, %p247
      %s249 = ssub.s32 %s21, %s28
      %p250 = scmp.eq.s32.totalorder %s249, 0
      %s252 = sadd.s32 %s251, 1
      %s253 = scalar_select %p250, %s251, %s252
      %p256 = pneg %p250
      %p257 = scmp.eq.s32.totalorder %s21, 1
      %p258 = por %p256, %p257
      %p259 = scmp.ne.s32.totalorder %s251, %s254
      %p260 = scmp.eq.s32.totalorder %s21, 0
      %p261 = por %p259, %p260
      %p262 = scmp.ne.s32.totalorder %s251, %s254
      %p263 = scmp.eq.s32.totalorder %s26, 1
      %p264 = por %p262, %p263
      %p265 = scmp.ne.s32.totalorder %s254, %s255
      %p266 = scmp.eq.s32.totalorder %s26, 0
      %p267 = por %p265, %p266
      %p268 = scmp.ne.s32.totalorder %s254, %s255
      %p269 = scmp.eq.s32.totalorder %s27, 1
      %p270 = por %p268, %p269
      %p272 = scmp.ne.s32.totalorder %s255, %s271
      %p273 = scmp.eq.s32.totalorder %s27, 0
      %p274 = por %p272, %p273
      %p275 = scmp.le.s32.totalorder 1, %s21
      %p276 = scmp.lt.s32.totalorder %s21, 3
      %p277 = pnand %p275, %p276
      %p278 = pneg %p277
      // Predicated region
      $region9: #{set_aggregator_forward.1} parent=5 // pred_check
        _
      $region10: #{set_aggregator_forward.1} parent=5 // pred_check_branch
        %280 = sbr.rel (%p277) target = $region12
      $region11: #{set_aggregator_forward.1} parent=5 // pred_region
        %s281 = ssub.s32 %s21, 1
        // Predicated region
        $region13: #{set_aggregator_forward.1} parent=11 // pred_check
          %p282 = pneg %p68
        $region14: #{set_aggregator_forward.1} parent=11 // pred_check_branch
          %284 = sbr.rel (%p282) target = $region16
        $region15: #{set_aggregator_forward.1} parent=11 // pred_region
          _
        $region16: #{set_aggregator_forward.1} parent=11 // pred_fallthru
          _
        // Predicated region
        $region17: #{set_aggregator_forward.1} parent=11 // pred_check
          %p285 = pneg %p89
        $region18: #{set_aggregator_forward.1} parent=11 // pred_check_branch
          %287 = sbr.rel (%p285) target = $region20
        $region19: #{set_aggregator_forward.1} parent=11 // pred_region
          _
        $region20: #{set_aggregator_forward.1} parent=11 // pred_fallthru
          _
        // Predicated region
        $region21: #{set_aggregator_forward.1} parent=11 // pred_check
          %p288 = pneg %p110
        $region22: #{set_aggregator_forward.1} parent=11 // pred_check_branch
          %290 = sbr.rel (%p288) target = $region24
        $region23: #{set_aggregator_forward.1} parent=11 // pred_region
          _
        $region24: #{set_aggregator_forward.1} parent=11 // pred_fallthru
          _
        // Predicated region
        $region25: #{set_aggregator_forward.1} parent=11 // pred_check
          %p291 = pneg %p131
        $region26: #{set_aggregator_forward.1} parent=11 // pred_check_branch
          %293 = sbr.rel (%p291) target = $region28
        $region27: #{set_aggregator_forward.1} parent=11 // pred_region
          _
        $region28: #{set_aggregator_forward.1} parent=11 // pred_fallthru
          _
        // Predicated region
        $region29: #{set_aggregator_forward.1} parent=11 // pred_check
          %p294 = pneg %p152
        $region30: #{set_aggregator_forward.1} parent=11 // pred_check_branch
          %296 = sbr.rel (%p294) target = $region32
        $region31: #{set_aggregator_forward.1} parent=11 // pred_region
          _
        $region32: #{set_aggregator_forward.1} parent=11 // pred_fallthru
          _
        // Predicated region
        $region33: #{set_aggregator_forward.1} parent=11 // pred_check
          %p297 = pneg %p173
        $region34: #{set_aggregator_forward.1} parent=11 // pred_check_branch
          %299 = sbr.rel (%p297) target = $region36
        $region35: #{set_aggregator_forward.1} parent=11 // pred_region
          _
        $region36: #{set_aggregator_forward.1} parent=11 // pred_fallthru
          _
        // Predicated region
        $region37: #{set_aggregator_forward.1} parent=11 // pred_check
          %p300 = pneg %p194
        $region38: #{set_aggregator_forward.1} parent=11 // pred_check_branch
          %302 = sbr.rel (%p300) target = $region40
        $region39: #{set_aggregator_forward.1} parent=11 // pred_region
          _
        $region40: #{set_aggregator_forward.1} parent=11 // pred_fallthru
          _
        // Predicated region
        $region41: #{set_aggregator_forward.1} parent=11 // pred_check
          %p303 = pneg %p215
        $region42: #{set_aggregator_forward.1} parent=11 // pred_check_branch
          %305 = sbr.rel (%p303) target = $region44
        $region43: #{set_aggregator_forward.1} parent=11 // pred_region
          _
        $region44: #{set_aggregator_forward.1} parent=11 // pred_fallthru
          _
      $region12: #{set_aggregator_forward.1} parent=5 // pred_fallthru
        _
      %p306 = scmp.lt.s32.totalorder %s21, 2
      // Predicated region
      $region45: #{set_aggregator_forward.1} parent=5 // pred_check
        %p307 = pneg %p306
      $region46: #{set_aggregator_forward.1} parent=5 // pred_check_branch
        %309 = sbr.rel (%p307) target = $region48
      $region47: #{set_aggregator_forward.1} parent=5 // pred_region
        // Predicated region
        $region49: #{set_aggregator_forward.1} parent=47 // pred_check
          %p310 = pneg %p41
        $region50: #{set_aggregator_forward.1} parent=47 // pred_check_branch
          %312 = sbr.rel (%p310) target = $region52
        $region51: #{set_aggregator_forward.1} parent=47 // pred_region
          %s313 = smul.u32 8, %s21
          %p314 = scmp.lt.s32.totalorder %s313, 15
          %s315 = scalar_select %p314, %s313, 15
          %s316 = smul.addr %s315, 8
          %s317 = scalar_lea.vmem %s0, %s316
          %s318 = smul.u32 8, %s21
        $region52: #{set_aggregator_forward.1} parent=47 // pred_fallthru
          _
      $region48: #{set_aggregator_forward.1} parent=5 // pred_fallthru
        _
      %p319 = scmp.le.s32.totalorder 1, %s21
      %p320 = scmp.lt.s32.totalorder %s21, 3
      %p321 = pnand %p319, %p320
      %p322 = pneg %p321
      // Predicated region
      $region53: #{set_aggregator_forward.1} parent=5 // pred_check
        _
      $region54: #{set_aggregator_forward.1} parent=5 // pred_check_branch
        %324 = sbr.rel (%p321) target = $region56
      $region55: #{set_aggregator_forward.1} parent=5 // pred_region
        %s325 = ssub.s32 %s21, 1
        %s326 = smul.u32 8, %s26
        %p327 = scmp.lt.s32.totalorder %s326, 15
        %s328 = scalar_select %p327, %s326, 15
        %s329 = smul.addr %s328, 8
        %s330 = scalar_lea.vmem %s0, %s329
        %p331 = pneg %p47
        %p332 = pneg %p44
        %p333 = pneg %p68
        %p334 = pneg %p65
        %p335 = pneg %p89
        %p336 = pneg %p86
        %p337 = pneg %p110
        %p338 = pneg %p107
        %p339 = pneg %p131
        %p340 = pneg %p128
        %p341 = pneg %p152
        %p342 = pneg %p149
        %p343 = pneg %p173
        %p344 = pneg %p170
        %p345 = pneg %p194
        %p346 = pneg %p191
        %p347 = pneg %p215
        %p348 = pneg %p212
        %p349 = pneg %p241
        %p350 = pneg %p238
        %p351 = scmp.lt.s32.totalorder %s26, 1
        %s352 = scalar_select %p351, %s26, 1
        %s353 = smul.addr %s352, 8
        %s354 = scalar_lea.vmem %s9, %s353
        %p355 = pneg %p267
        %p356 = pneg %p264
        %s357 = sand.u32 %s254, 1
        %s358 = scalar_lea.sflag [#allocation4], %s357
        %s359 = sand.u32 %s254, 1
        %s360 = smul.addr %s359, 8
        %s361 = scalar_lea.vmem [#allocation3], %s360
        %s362 = smul.u32 8, %s26
        %p363 = scmp.lt.s32.totalorder %s362, 15
        %s364 = scalar_select %p363, %s362, 15
        %s365 = smul.addr %s364, 8
        %s366 = scalar_lea.vmem %s0, %s365
        %s367 = smul.u32 8, %s26
        %p368 = scmp.lt.s32.totalorder %s26, 1
        %s369 = scalar_select %p368, %s26, 1
        %s370 = smul.addr %s369, 8
        %s371 = scalar_lea.vmem %s9, %s370
        %v372 = vld [vmem:[%s366] sm:$0xff]
        %v373 = vld [vmem:[%s366 + $0x8] sm:$0xff]
        %v374 = vld [vmem:[%s366 + $0x10] sm:$0xff]
        %v375 = vld [vmem:[%s366 + $0x18] sm:$0xff]
        %v376 = vld [vmem:[%s366 + $0x20] sm:$0xff]
        %v377 = vld [vmem:[%s366 + $0x28] sm:$0xff]
        %v378 = vld [vmem:[%s366 + $0x30] sm:$0xff]
        %v379 = vld [vmem:[%s366 + $0x38] sm:$0xff]
        %v380 = vld [vmem:[%s2] sm:$0xff]
        %v381 = vld [vmem:[%s2 + $0x8] sm:$0xff]
        %v382 = vld [vmem:[%s2 + $0x10] sm:$0xff]
        %v383 = vld [vmem:[%s2 + $0x18] sm:$0xff]
        %v384 = vld [vmem:[%s3] sm:$0x1]
        %v386 = vlaneseq
        %v387 = vshrl.u32 %v386, 7
        %v388 = vsub.s32 0, %v387
        %v389 = vrot.slane %v384, %v388
        %vm391 = vcmask 261120
        %v393 = vsel %vm391, %v372, 0
        %v396 = vsel %vm391, %v373, 0
        %v399 = vsel %vm391, %v374, 0
        %v402 = vsel %vm391, %v375, 0
        %v405 = vsel %vm391, %v376, 0
        %v408 = vsel %vm391, %v377, 0
        %v411 = vsel %vm391, %v378, 0
        %v414 = vsel %vm391, %v379, 0
        %416 = vmatprep.subr.mxu0 0.0
        %417 = vmatpush1.msra.mxu0 0.0
        %418 = vmatprep.subr.mxu0 0.0
        %419 = vmatpush1.msra.mxu0 0.0
        %420 = vmatprep.subr.mxu0 0.0
        %421 = vmatpush1.msra.mxu0 0.0
        %422 = vmatprep.subr.mxu0 0.0
        %423 = vmatpush1.msra.mxu0 0.0
        %424 = vmatprep.subr.mxu0 0.0
        %425 = vmatpush1.msra.mxu0 0.0
        %426 = vmatprep.subr.mxu0 0.0
        %427 = vmatpush1.msra.mxu0 0.0
        %428 = vmatprep.subr.mxu0 0.0
        %429 = vmatpush1.msra.mxu0 0.0
        %430 = vmatprep.subr.mxu0 0.0
        %431 = vmatpush1.msra.mxu0 0.0
        %432 = vmatprep.subr.mxu0 0.0
        %433 = vmatpush1.msra.mxu0 0.0
        %434 = vmatprep.subr.mxu0 0.0
        %435 = vmatpush1.msra.mxu0 0.0
        %436 = vmatprep.subr.mxu0 0.0
        %437 = vmatpush1.msra.mxu0 0.0
        %438 = vmatprep.subr.mxu0 0.0
        %439 = vmatpush1.msra.mxu0 0.0
        %440 = vmatprep.subr.mxu0 0.0
        %441 = vmatpush1.msra.mxu0 %v383
        %442 = vmatprep.subr.mxu0 0.0
        %443 = vmatpush1.msra.mxu0 %v382
        %444 = vmatprep.subr.mxu0 0.0
        %445 = vmatpush1.msra.mxu0 %v381
        %446 = vmatprep.subr.mxu0 0.0
        %447 = vmatpush1.msra.mxu0 %v380
        %448 = vmatprep.subr.mxu0 0.0
        %449 = vmatpush2.msra.mxu0 0.0
        %450 = vmatprep.subr.mxu0 0.0
        %451 = vmatpush2.msra.mxu0 0.0
        %452 = vmatprep.subr.mxu0 0.0
        %453 = vmatpush2.msra.mxu0 0.0
        %454 = vmatprep.subr.mxu0 0.0
        %455 = vmatpush2.msra.mxu0 0.0
        %456 = vmatprep.subr.mxu0 0.0
        %457 = vmatpush2.msra.mxu0 0.0
        %458 = vmatprep.subr.mxu0 0.0
        %459 = vmatpush2.msra.mxu0 0.0
        %460 = vmatprep.subr.mxu0 0.0
        %461 = vmatpush2.msra.mxu0 0.0
        %462 = vmatprep.subr.mxu0 0.0
        %463 = vmatpush2.msra.mxu0 0.0
        %464 = vmatprep.subr.mxu0 0.0
        %465 = vmatpush2.msra.mxu0 0.0
        %466 = vmatprep.subr.mxu0 0.0
        %467 = vmatpush2.msra.mxu0 0.0
        %468 = vmatprep.subr.mxu0 0.0
        %469 = vmatpush2.msra.mxu0 0.0
        %470 = vmatprep.subr.mxu0 0.0
        %471 = vmatpush2.msra.mxu0 0.0
        %472 = vmatprep.subr.mxu0 0.0
        %473 = vmatpush2.msra.mxu0 0.0
        %474 = vmatprep.subr.mxu0 0.0
        %475 = vmatpush2.msra.mxu0 0.0
        %476 = vmatprep.subr.mxu0 0.0
        %477 = vmatpush2.msra.mxu0 0.0
        %478 = vmatprep.subr.mxu0 0.0
        %479 = vmatpush2.msra.mxu0 0.0
        %480 = vmatprep.mubr.f32.mxu0 0.0
        %481 = vmatmul.mubr.f32.gmra.mxu0 %v393
        %v482 = vpop.f32.mrf.mxu0
        %v483 = vadd.f32 %v389, %v482
        %v484 = vpop.f32.mrf.mxu0
        %485 = vmatprep.mubr.f32.mxu0 0.0
        %486 = vmatmul.mubr.f32.gmra.mxu0 %v396
        %v487 = vpop.f32.mrf.mxu0
        %v488 = vadd.f32 %v389, %v487
        %v489 = vpop.f32.mrf.mxu0
        %490 = vmatprep.mubr.f32.mxu0 0.0
        %491 = vmatmul.mubr.f32.gmra.mxu0 %v399
        %v492 = vpop.f32.mrf.mxu0
        %v493 = vadd.f32 %v389, %v492
        %v494 = vpop.f32.mrf.mxu0
        %495 = vmatprep.mubr.f32.mxu0 0.0
        %496 = vmatmul.mubr.f32.gmra.mxu0 %v402
        %v497 = vpop.f32.mrf.mxu0
        %v498 = vadd.f32 %v389, %v497
        %v499 = vpop.f32.mrf.mxu0
        %500 = vmatprep.mubr.f32.mxu0 0.0
        %501 = vmatmul.mubr.f32.gmra.mxu0 %v405
        %v502 = vpop.f32.mrf.mxu0
        %v503 = vadd.f32 %v389, %v502
        %v504 = vpop.f32.mrf.mxu0
        %505 = vmatprep.mubr.f32.mxu0 0.0
        %506 = vmatmul.mubr.f32.gmra.mxu0 %v408
        %v507 = vpop.f32.mrf.mxu0
        %v508 = vadd.f32 %v389, %v507
        %v509 = vpop.f32.mrf.mxu0
        %510 = vmatprep.mubr.f32.mxu0 0.0
        %511 = vmatmul.mubr.f32.gmra.mxu0 %v411
        %v512 = vpop.f32.mrf.mxu0
        %v513 = vadd.f32 %v389, %v512
        %v514 = vpop.f32.mrf.mxu0
        %515 = vmatprep.mubr.f32.mxu0 0.0
        %516 = vmatmul.mubr.f32.gmra.mxu0 %v414
        %v517 = vpop.f32.mrf.mxu0
        %v518 = vadd.f32 %v389, %v517
        %v519 = vpop.f32.mrf.mxu0
        %520 = vdwg.mxu0
        %vm521 = vcmask 294144
        %v522 = vsel %vm521, %v483, -inf
        %v523 = vrot.slane %v522, 4
        %v524 = vmax.f32 %v522, %v523
        %v525 = vrot.slane %v524, 2
        %v526 = vmax.f32 %v524, %v525
        %v527 = vrot.slane %v526, 1
        %v528 = vmax.f32 %v526, %v527
        %v529 = vsel %vm521, %v488, -inf
        %v530 = vrot.slane %v529, 4
        %v531 = vmax.f32 %v529, %v530
        %v532 = vrot.slane %v531, 2
        %v533 = vmax.f32 %v531, %v532
        %v534 = vrot.slane %v533, 1
        %v535 = vmax.f32 %v533, %v534
        %v536 = vsel %vm521, %v493, -inf
        %v537 = vrot.slane %v536, 4
        %v538 = vmax.f32 %v536, %v537
        %v539 = vrot.slane %v538, 2
        %v540 = vmax.f32 %v538, %v539
        %v541 = vrot.slane %v540, 1
        %v542 = vmax.f32 %v540, %v541
        %v543 = vsel %vm521, %v498, -inf
        %v544 = vrot.slane %v543, 4
        %v545 = vmax.f32 %v543, %v544
        %v546 = vrot.slane %v545, 2
        %v547 = vmax.f32 %v545, %v546
        %v548 = vrot.slane %v547, 1
        %v549 = vmax.f32 %v547, %v548
        %v550 = vsel %vm521, %v503, -inf
        %v551 = vrot.slane %v550, 4
        %v552 = vmax.f32 %v550, %v551
        %v553 = vrot.slane %v552, 2
        %v554 = vmax.f32 %v552, %v553
        %v555 = vrot.slane %v554, 1
        %v556 = vmax.f32 %v554, %v555
        %v557 = vsel %vm521, %v508, -inf
        %v558 = vrot.slane %v557, 4
        %v559 = vmax.f32 %v557, %v558
        %v560 = vrot.slane %v559, 2
        %v561 = vmax.f32 %v559, %v560
        %v562 = vrot.slane %v561, 1
        %v563 = vmax.f32 %v561, %v562
        %v564 = vsel %vm521, %v513, -inf
        %v565 = vrot.slane %v564, 4
        %v566 = vmax.f32 %v564, %v565
        %v567 = vrot.slane %v566, 2
        %v568 = vmax.f32 %v566, %v567
        %v569 = vrot.slane %v568, 1
        %v570 = vmax.f32 %v568, %v569
        %v571 = vsel %vm521, %v518, -inf
        %v572 = vrot.slane %v571, 4
        %v573 = vmax.f32 %v571, %v572
        %v574 = vrot.slane %v573, 2
        %v575 = vmax.f32 %v573, %v574
        %v576 = vrot.slane %v575, 1
        %v577 = vmax.f32 %v575, %v576
        %v578 = vsub.f32 %v483, %v528
        %v579 = vsub.f32 %v488, %v535
        %v580 = vsub.f32 %v493, %v542
        %v581 = vsub.f32 %v498, %v549
        %v582 = vsub.f32 %v503, %v556
        %v583 = vsub.f32 %v508, %v563
        %v584 = vsub.f32 %v513, %v570
        %v585 = vsub.f32 %v518, %v577
        %v586 = vmul.f32 %v578, 1.442695
        %v587 = vpow.pop %v586
        %v588 = vmul.f32 %v579, 1.442695
        %v589 = vpow.pop %v588
        %v590 = vmul.f32 %v580, 1.442695
        %v591 = vpow.pop %v590
        %v592 = vmul.f32 %v581, 1.442695
        %v593 = vpow.pop %v592
        %v594 = vmul.f32 %v582, 1.442695
        %v595 = vpow.pop %v594
        %v596 = vmul.f32 %v583, 1.442695
        %v597 = vpow.pop %v596
        %v598 = vmul.f32 %v584, 1.442695
        %v599 = vpow.pop %v598
        %v600 = vmul.f32 %v585, 1.442695
        %v601 = vpow.pop %v600
        %v602 = vsel %vm521, %v587, 0.0
        %v603 = vrot.slane %v602, 4
        %v604 = vadd.f32 %v602, %v603
        %v605 = vrot.slane %v604, 2
        %v606 = vadd.f32 %v604, %v605
        %v607 = vrot.slane %v606, 1
        %v608 = vadd.f32 %v606, %v607
        %v609 = vsel %vm521, %v589, 0.0
        %v610 = vrot.slane %v609, 4
        %v611 = vadd.f32 %v609, %v610
        %v612 = vrot.slane %v611, 2
        %v613 = vadd.f32 %v611, %v612
        %v614 = vrot.slane %v613, 1
        %v615 = vadd.f32 %v613, %v614
        %v616 = vsel %vm521, %v591, 0.0
        %v617 = vrot.slane %v616, 4
        %v618 = vadd.f32 %v616, %v617
        %v619 = vrot.slane %v618, 2
        %v620 = vadd.f32 %v618, %v619
        %v621 = vrot.slane %v620, 1
        %v622 = vadd.f32 %v620, %v621
        %v623 = vsel %vm521, %v593, 0.0
        %v624 = vrot.slane %v623, 4
        %v625 = vadd.f32 %v623, %v624
        %v626 = vrot.slane %v625, 2
        %v627 = vadd.f32 %v625, %v626
        %v628 = vrot.slane %v627, 1
        %v629 = vadd.f32 %v627, %v628
        %v630 = vsel %vm521, %v595, 0.0
        %v631 = vrot.slane %v630, 4
        %v632 = vadd.f32 %v630, %v631
        %v633 = vrot.slane %v632, 2
        %v634 = vadd.f32 %v632, %v633
        %v635 = vrot.slane %v634, 1
        %v636 = vadd.f32 %v634, %v635
        %v637 = vsel %vm521, %v597, 0.0
        %v638 = vrot.slane %v637, 4
        %v639 = vadd.f32 %v637, %v638
        %v640 = vrot.slane %v639, 2
        %v641 = vadd.f32 %v639, %v640
        %v642 = vrot.slane %v641, 1
        %v643 = vadd.f32 %v641, %v642
        %v644 = vsel %vm521, %v599, 0.0
        %v645 = vrot.slane %v644, 4
        %v646 = vadd.f32 %v644, %v645
        %v647 = vrot.slane %v646, 2
        %v648 = vadd.f32 %v646, %v647
        %v649 = vrot.slane %v648, 1
        %v650 = vadd.f32 %v648, %v649
        %v651 = vsel %vm521, %v601, 0.0
        %v652 = vrot.slane %v651, 4
        %v653 = vadd.f32 %v651, %v652
        %v654 = vrot.slane %v653, 2
        %v655 = vadd.f32 %v653, %v654
        %v656 = vrot.slane %v655, 1
        %v657 = vadd.f32 %v655, %v656
        %v658 = vrcp.pop %v608
        %v659 = vrcp.pop %v615
        %v660 = vrcp.pop %v622
        %v661 = vrcp.pop %v629
        %v662 = vrcp.pop %v636
        %v663 = vrcp.pop %v643
        %v664 = vrcp.pop %v650
        %v665 = vrcp.pop %v657
        %v666 = vmul.f32 %v587, %v658
        %v667 = vmul.f32 %v589, %v659
        %v668 = vmul.f32 %v591, %v660
        %v669 = vmul.f32 %v593, %v661
        %v670 = vmul.f32 %v595, %v662
        %v671 = vmul.f32 %v597, %v663
        %v672 = vmul.f32 %v599, %v664
        %v673 = vmul.f32 %v601, %v665
        %v674 = vld [vmem:[%s4] sm:$0xf]
        %683 = vrot.lane.b32.xlu0 %v666, 96
        %v684 = vpop.permute.xlu0 %683
        %685 = vrot.lane.b32.xlu0 %v667, 96
        %v686 = vpop.permute.xlu0 %685
        %687 = vrot.lane.b32.xlu0 %v668, 96
        %v688 = vpop.permute.xlu0 %687
        %689 = vrot.lane.b32.xlu0 %v669, 96
        %v690 = vpop.permute.xlu0 %689
        %691 = vrot.lane.b32.xlu0 %v670, 96
        %v692 = vpop.permute.xlu0 %691
        %693 = vrot.lane.b32.xlu0 %v671, 96
        %v694 = vpop.permute.xlu0 %693
        %695 = vrot.lane.b32.xlu0 %v672, 96
        %v696 = vpop.permute.xlu0 %695
        %697 = vrot.lane.b32.xlu0 %v673, 96
        %v698 = vpop.permute.xlu0 %697
        %vm699 = vcmask 31744
        %v700 = vsel %vm699, %v684, 0
        %v702 = vsel %vm699, %v686, 0
        %v704 = vsel %vm699, %v688, 0
        %v706 = vsel %vm699, %v690, 0
        %v708 = vsel %vm699, %v692, 0
        %v710 = vsel %vm699, %v694, 0
        %v712 = vsel %vm699, %v696, 0
        %v714 = vsel %vm699, %v698, 0
        %vm716 = vcmask 1043456
        %v718 = vsel %vm716, %v674, 0
        %720 = vmatprep.subr.mxu0 0.0
        %721 = vmatpush1.msra.mxu0 0.0
        %722 = vmatprep.subr.mxu0 0.0
        %723 = vmatpush1.msra.mxu0 0.0
        %724 = vmatprep.subr.mxu0 0.0
        %725 = vmatpush1.msra.mxu0 0.0
        %726 = vmatprep.subr.mxu0 0.0
        %727 = vmatpush1.msra.mxu0 0.0
        %728 = vmatprep.subr.mxu0 0.0
        %729 = vmatpush1.msra.mxu0 0.0
        %730 = vmatprep.subr.mxu0 0.0
        %731 = vmatpush1.msra.mxu0 0.0
        %732 = vmatprep.subr.mxu0 0.0
        %733 = vmatpush1.msra.mxu0 0.0
        %734 = vmatprep.subr.mxu0 0.0
        %735 = vmatpush1.msra.mxu0 0.0
        %736 = vmatprep.subr.mxu0 0.0
        %737 = vmatpush1.msra.mxu0 0.0
        %738 = vmatprep.subr.mxu0 0.0
        %739 = vmatpush1.msra.mxu0 0.0
        %740 = vmatprep.subr.mxu0 0.0
        %741 = vmatpush1.msra.mxu0 0.0
        %742 = vmatprep.subr.mxu0 0.0
        %743 = vmatpush1.msra.mxu0 0.0
        %744 = vmatprep.subr.mxu0 0.0
        %745 = vmatpush1.msra.mxu0 0.0
        %746 = vmatprep.subr.mxu0 0.0
        %747 = vmatpush1.msra.mxu0 0.0
        %748 = vmatprep.subr.mxu0 0.0
        %749 = vmatpush1.msra.mxu0 0.0
        %750 = vmatprep.subr.mxu0 0.0
        %751 = vmatpush1.msra.mxu0 %v718
        %752 = vmatprep.subr.mxu0 0.0
        %753 = vmatpush2.msra.mxu0 0.0
        %754 = vmatprep.subr.mxu0 0.0
        %755 = vmatpush2.msra.mxu0 0.0
        %756 = vmatprep.subr.mxu0 0.0
        %757 = vmatpush2.msra.mxu0 0.0
        %758 = vmatprep.subr.mxu0 0.0
        %759 = vmatpush2.msra.mxu0 0.0
        %760 = vmatprep.subr.mxu0 0.0
        %761 = vmatpush2.msra.mxu0 0.0
        %762 = vmatprep.subr.mxu0 0.0
        %763 = vmatpush2.msra.mxu0 0.0
        %764 = vmatprep.subr.mxu0 0.0
        %765 = vmatpush2.msra.mxu0 0.0
        %766 = vmatprep.subr.mxu0 0.0
        %767 = vmatpush2.msra.mxu0 0.0
        %768 = vmatprep.subr.mxu0 0.0
        %769 = vmatpush2.msra.mxu0 0.0
        %770 = vmatprep.subr.mxu0 0.0
        %771 = vmatpush2.msra.mxu0 0.0
        %772 = vmatprep.subr.mxu0 0.0
        %773 = vmatpush2.msra.mxu0 0.0
        %774 = vmatprep.subr.mxu0 0.0
        %775 = vmatpush2.msra.mxu0 0.0
        %776 = vmatprep.subr.mxu0 0.0
        %777 = vmatpush2.msra.mxu0 0.0
        %778 = vmatprep.subr.mxu0 0.0
        %779 = vmatpush2.msra.mxu0 0.0
        %780 = vmatprep.subr.mxu0 0.0
        %781 = vmatpush2.msra.mxu0 0.0
        %782 = vmatprep.subr.mxu0 0.0
        %783 = vmatpush2.msra.mxu0 0.0
        %784 = vmatprep.mubr.f32.mxu0 0.0
        %785 = vmatmul.mubr.f32.gmra.mxu0 %v700
        %v786 = vpop.f32.mrf.mxu0
        %v787 = vadd.f32 0.0, %v786
        %v788 = vpop.f32.mrf.mxu0
        %789 = vmatprep.mubr.f32.mxu0 0.0
        %790 = vmatmul.mubr.f32.gmra.mxu0 %v702
        %v791 = vpop.f32.mrf.mxu0
        %v792 = vadd.f32 0.0, %v791
        %v793 = vpop.f32.mrf.mxu0
        %794 = vmatprep.mubr.f32.mxu0 0.0
        %795 = vmatmul.mubr.f32.gmra.mxu0 %v704
        %v796 = vpop.f32.mrf.mxu0
        %v797 = vadd.f32 0.0, %v796
        %v798 = vpop.f32.mrf.mxu0
        %799 = vmatprep.mubr.f32.mxu0 0.0
        %800 = vmatmul.mubr.f32.gmra.mxu0 %v706
        %v801 = vpop.f32.mrf.mxu0
        %v802 = vadd.f32 0.0, %v801
        %v803 = vpop.f32.mrf.mxu0
        %804 = vmatprep.mubr.f32.mxu0 0.0
        %805 = vmatmul.mubr.f32.gmra.mxu0 %v708
        %v806 = vpop.f32.mrf.mxu0
        %v807 = vadd.f32 0.0, %v806
        %v808 = vpop.f32.mrf.mxu0
        %809 = vmatprep.mubr.f32.mxu0 0.0
        %810 = vmatmul.mubr.f32.gmra.mxu0 %v710
        %v811 = vpop.f32.mrf.mxu0
        %v812 = vadd.f32 0.0, %v811
        %v813 = vpop.f32.mrf.mxu0
        %814 = vmatprep.mubr.f32.mxu0 0.0
        %815 = vmatmul.mubr.f32.gmra.mxu0 %v712
        %v816 = vpop.f32.mrf.mxu0
        %v817 = vadd.f32 0.0, %v816
        %v818 = vpop.f32.mrf.mxu0
        %819 = vmatprep.mubr.f32.mxu0 0.0
        %820 = vmatmul.mubr.f32.gmra.mxu0 %v714
        %v821 = vpop.f32.mrf.mxu0
        %v822 = vadd.f32 0.0, %v821
        %v823 = vpop.f32.mrf.mxu0
        %824 = vdwg.mxu0
        %v825 = vmul.f32 %v787, %v483
        %v826 = vmul.f32 %v792, %v488
        %v827 = vmul.f32 %v797, %v493
        %v828 = vmul.f32 %v802, %v498
        %v829 = vmul.f32 %v807, %v503
        %v830 = vmul.f32 %v812, %v508
        %v831 = vmul.f32 %v817, %v513
        %v832 = vmul.f32 %v822, %v518
        %v833 = vsel %vm391, %v825, 0.0
        %v834 = vrot.slane %v833, 4
        %v835 = vadd.f32 %v833, %v834
        %v836 = vrot.slane %v835, 2
        %v837 = vadd.f32 %v835, %v836
        %v838 = vrot.slane %v837, 1
        %v839 = vadd.f32 %v837, %v838
        %v840 = vsel %vm391, %v826, 0.0
        %v841 = vrot.slane %v840, 4
        %v842 = vadd.f32 %v840, %v841
        %v843 = vrot.slane %v842, 2
        %v844 = vadd.f32 %v842, %v843
        %v845 = vrot.slane %v844, 1
        %v846 = vadd.f32 %v844, %v845
        %v847 = vsel %vm391, %v827, 0.0
        %v848 = vrot.slane %v847, 4
        %v849 = vadd.f32 %v847, %v848
        %v850 = vrot.slane %v849, 2
        %v851 = vadd.f32 %v849, %v850
        %v852 = vrot.slane %v851, 1
        %v853 = vadd.f32 %v851, %v852
        %v854 = vsel %vm391, %v828, 0.0
        %v855 = vrot.slane %v854, 4
        %v856 = vadd.f32 %v854, %v855
        %v857 = vrot.slane %v856, 2
        %v858 = vadd.f32 %v856, %v857
        %v859 = vrot.slane %v858, 1
        %v860 = vadd.f32 %v858, %v859
        %v861 = vsel %vm391, %v829, 0.0
        %v862 = vrot.slane %v861, 4
        %v863 = vadd.f32 %v861, %v862
        %v864 = vrot.slane %v863, 2
        %v865 = vadd.f32 %v863, %v864
        %v866 = vrot.slane %v865, 1
        %v867 = vadd.f32 %v865, %v866
        %v868 = vsel %vm391, %v830, 0.0
        %v869 = vrot.slane %v868, 4
        %v870 = vadd.f32 %v868, %v869
        %v871 = vrot.slane %v870, 2
        %v872 = vadd.f32 %v870, %v871
        %v873 = vrot.slane %v872, 1
        %v874 = vadd.f32 %v872, %v873
        %v875 = vsel %vm391, %v831, 0.0
        %v876 = vrot.slane %v875, 4
        %v877 = vadd.f32 %v875, %v876
        %v878 = vrot.slane %v877, 2
        %v879 = vadd.f32 %v877, %v878
        %v880 = vrot.slane %v879, 1
        %v881 = vadd.f32 %v879, %v880
        %v882 = vsel %vm391, %v832, 0.0
        %v883 = vrot.slane %v882, 4
        %v884 = vadd.f32 %v882, %v883
        %v885 = vrot.slane %v884, 2
        %v886 = vadd.f32 %v884, %v885
        %v887 = vrot.slane %v886, 1
        %v888 = vadd.f32 %v886, %v887
        %v889 = vld [vmem:[%s1] sm:$0x1]
        %v891 = vlaneseq
        %v892 = vshrl.u32 %v891, 7
        %v893 = vsub.s32 0, %v892
        %v894 = vrot.slane %v889, %v893
        %vm904 = vcmask 1041409
        %v905 = vsel %vm904, %v846, %v839
        %vm906 = vcmask 1042434
        %v907 = vsel %vm906, %v853, %v905
        %vm908 = vcmask 1043459
        %v909 = vsel %vm908, %v860, %v907
        %vm910 = vcmask 1044484
        %v911 = vsel %vm910, %v867, %v909
        %vm912 = vcmask 1045509
        %v913 = vsel %vm912, %v874, %v911
        %vm914 = vcmask 1046534
        %v915 = vsel %vm914, %v881, %v913
        %vm916 = vcmask 1047559
        %v917 = vsel %vm916, %v888, %v915
        %v919 = vadd.f32 %v894, %v917
        %v920 = vld [vmem:[%s5] sm:$0xff]
        %v921 = vld [vmem:[%s5 + $0x8] sm:$0xff]
        %v922 = vld [vmem:[%s5 + $0x10] sm:$0xff]
        %v923 = vld [vmem:[%s5 + $0x18] sm:$0xff]
        %v924 = vld [vmem:[%s6] sm:$0x1]
        %v926 = vlaneseq
        %v927 = vshrl.u32 %v926, 7
        %v928 = vsub.s32 0, %v927
        %v929 = vrot.slane %v924, %v928
        %v932 = vsel %vm391, %v919, 0
        %934 = vmatprep.subr.mxu0 0.0
        %935 = vmatpush1.msra.mxu0 0.0
        %936 = vmatprep.subr.mxu0 0.0
        %937 = vmatpush1.msra.mxu0 0.0
        %938 = vmatprep.subr.mxu0 0.0
        %939 = vmatpush1.msra.mxu0 0.0
        %940 = vmatprep.subr.mxu0 0.0
        %941 = vmatpush1.msra.mxu0 0.0
        %942 = vmatprep.subr.mxu0 0.0
        %943 = vmatpush1.msra.mxu0 0.0
        %944 = vmatprep.subr.mxu0 0.0
        %945 = vmatpush1.msra.mxu0 0.0
        %946 = vmatprep.subr.mxu0 0.0
        %947 = vmatpush1.msra.mxu0 0.0
        %948 = vmatprep.subr.mxu0 0.0
        %949 = vmatpush1.msra.mxu0 0.0
        %950 = vmatprep.subr.mxu0 0.0
        %951 = vmatpush1.msra.mxu0 0.0
        %952 = vmatprep.subr.mxu0 0.0
        %953 = vmatpush1.msra.mxu0 0.0
        %954 = vmatprep.subr.mxu0 0.0
        %955 = vmatpush1.msra.mxu0 0.0
        %956 = vmatprep.subr.mxu0 0.0
        %957 = vmatpush1.msra.mxu0 0.0
        %958 = vmatprep.subr.mxu0 0.0
        %959 = vmatpush1.msra.mxu0 %v923
        %960 = vmatprep.subr.mxu0 0.0
        %961 = vmatpush1.msra.mxu0 %v922
        %962 = vmatprep.subr.mxu0 0.0
        %963 = vmatpush1.msra.mxu0 %v921
        %964 = vmatprep.subr.mxu0 0.0
        %965 = vmatpush1.msra.mxu0 %v920
        %966 = vmatprep.subr.mxu0 0.0
        %967 = vmatpush2.msra.mxu0 0.0
        %968 = vmatprep.subr.mxu0 0.0
        %969 = vmatpush2.msra.mxu0 0.0
        %970 = vmatprep.subr.mxu0 0.0
        %971 = vmatpush2.msra.mxu0 0.0
        %972 = vmatprep.subr.mxu0 0.0
        %973 = vmatpush2.msra.mxu0 0.0
        %974 = vmatprep.subr.mxu0 0.0
        %975 = vmatpush2.msra.mxu0 0.0
        %976 = vmatprep.subr.mxu0 0.0
        %977 = vmatpush2.msra.mxu0 0.0
        %978 = vmatprep.subr.mxu0 0.0
        %979 = vmatpush2.msra.mxu0 0.0
        %980 = vmatprep.subr.mxu0 0.0
        %981 = vmatpush2.msra.mxu0 0.0
        %982 = vmatprep.subr.mxu0 0.0
        %983 = vmatpush2.msra.mxu0 0.0
        %984 = vmatprep.subr.mxu0 0.0
        %985 = vmatpush2.msra.mxu0 0.0
        %986 = vmatprep.subr.mxu0 0.0
        %987 = vmatpush2.msra.mxu0 0.0
        %988 = vmatprep.subr.mxu0 0.0
        %989 = vmatpush2.msra.mxu0 0.0
        %990 = vmatprep.subr.mxu0 0.0
        %991 = vmatpush2.msra.mxu0 0.0
        %992 = vmatprep.subr.mxu0 0.0
        %993 = vmatpush2.msra.mxu0 0.0
        %994 = vmatprep.subr.mxu0 0.0
        %995 = vmatpush2.msra.mxu0 0.0
        %996 = vmatprep.subr.mxu0 0.0
        %997 = vmatpush2.msra.mxu0 0.0
        %998 = vmatprep.mubr.f32.mxu0 0.0
        %999 = vmatmul.mubr.f32.gmra.mxu0 %v932
        %v1000 = vpop.f32.mrf.mxu0
        %v1001 = vadd.f32 %v929, %v1000
        %v1002 = vpop.f32.mrf.mxu0
        %1003 = vdwg.mxu0
        %v1004 = vmax.f32 %v1001, 0.0
        %v1005 = vadd.f32 %v919, %v1004
        %1006 = vst.msk [vmem:[%s361] sm:$0xff] %vm391, %v1005
        %v1007 = vld [vmem:[%s7] sm:$0x1]
        %v1009 = vlaneseq
        %v1010 = vshrl.u32 %v1009, 7
        %v1011 = vsub.s32 0, %v1010
        %v1012 = vrot.slane %v1007, %v1011
        %v1014 = vmul.f32 %v1005, %v1012
        %v1015 = vsel %vm391, %v1014, 0.0
        %1016 = vadd.xlane.f32.xlu0 %v1015
        %v1017 = vpop.xlane.xlu0 %1016
        %s1018 = sld [smem:[#allocation2]]
        %v1019 = vstv %s1018
        %v1020 = vadd.f32 %v1017, %v1019
        %v1021 = vxor.u32 %v1020, 2147483648
        %v1022 = vmul.f32 %v1021, 1.442695
        %v1023 = vpow.pop %v1022
        %v1024 = vadd.f32 %v1023, 1.0
        %v1025 = vrcp.pop %v1024
        %v1026 = vmul.f32 1.0, %v1025
        %vm1027 = vcmask 7168
        %1028 = vst.msk [vmem:[%s371] sm:$0xff] %vm1027, %v1026
        %p1029 = scmp.lt.s32.totalorder %s26, 1
        %s1030 = scalar_select %p1029, %s26, 1
        %s1031 = smul.addr %s1030, 8
        %s1032 = scalar_lea.vmem %s9, %s1031
        %s1033 = sand.u32 %s254, 1
        %s1034 = scalar_lea.sflag [#allocation4], %s1033
        %s1035 = sand.u32 %s254, 1
        %s1036 = smul.addr %s1035, 8
        %s1037 = scalar_lea.vmem [#allocation3], %s1036
        // Predicated region
        $region57: #{set_aggregator_forward.1} parent=55 // pred_check
          %p1038 = pneg %p238
        $region58: #{set_aggregator_forward.1} parent=55 // pred_check_branch
          %1040 = sbr.rel (%p1038) target = $region60
        $region59: #{set_aggregator_forward.1} parent=55 // pred_region
          _
        $region60: #{set_aggregator_forward.1} parent=55 // pred_fallthru
          _
        // Predicated region
        $region61: #{set_aggregator_forward.1} parent=55 // pred_check
          %p1041 = pneg %p264
        $region62: #{set_aggregator_forward.1} parent=55 // pred_check_branch
          %1043 = sbr.rel (%p1041) target = $region64
        $region63: #{set_aggregator_forward.1} parent=55 // pred_region
          %s1045 = ssub.s32 128, 128
          %1046 = vsyncadd %s1034, %s1045
          %s1047 = smul.addr %s26, 128
          %s1048 = scalar_lea.hbm %s10, %s1047
          %s1050 = sshll.u32 %s1037, 4
          %s1051 = int_to_ptr.vmem [resolvable:$true] %s1050
          %1053 = dma.vmem_to_hbm [thread:$0]  %s1051, 128, %s1048, %s1034
        $region64: #{set_aggregator_forward.1} parent=55 // pred_fallthru
          _
      $region56: #{set_aggregator_forward.1} parent=5 // pred_fallthru
        _
      %p1054 = scmp.le.s32.totalorder 2, %s21
      // Predicated region
      $region65: #{set_aggregator_forward.1} parent=5 // pred_check
        %p1055 = pneg %p1054
      $region66: #{set_aggregator_forward.1} parent=5 // pred_check_branch
        %1057 = sbr.rel (%p1055) target = $region68
      $region67: #{set_aggregator_forward.1} parent=5 // pred_region
        %s1058 = ssub.s32 %s21, 2
        // Predicated region
        $region69: #{set_aggregator_forward.1} parent=67 // pred_check
          %p1059 = pneg %p244
        $region70: #{set_aggregator_forward.1} parent=67 // pred_check_branch
          %1061 = sbr.rel (%p1059) target = $region72
        $region71: #{set_aggregator_forward.1} parent=67 // pred_region
          %p1062 = scmp.lt.s32.totalorder %s27, 1
          %s1063 = scalar_select %p1062, %s27, 1
          %s1064 = smul.addr %s1063, 8
          %s1065 = scalar_lea.vmem %s9, %s1064
        $region72: #{set_aggregator_forward.1} parent=67 // pred_fallthru
          _
        // Predicated region
        $region73: #{set_aggregator_forward.1} parent=67 // pred_check
          %p1066 = pneg %p270
        $region74: #{set_aggregator_forward.1} parent=67 // pred_check_branch
          %1068 = sbr.rel (%p1066) target = $region76
        $region75: #{set_aggregator_forward.1} parent=67 // pred_region
          %s1069 = sand.u32 %s255, 1
          %s1070 = scalar_lea.sflag [#allocation4], %s1069
          %s1071 = sand.u32 %s255, 1
          %s1072 = smul.addr %s1071, 8
          %s1073 = scalar_lea.vmem [#allocation3], %s1072
          %1074 = dma.done %s1070, 128
        $region76: #{set_aggregator_forward.1} parent=67 // pred_fallthru
          _
      $region68: #{set_aggregator_forward.1} parent=5 // pred_fallthru
        _
    $region6: #{set_aggregator_forward.1} parent=1 // loop_footer
      %s25 = sadd.s32 1, %s21
    $region7: #{set_aggregator_forward.1} parent=1 // loop_footer_branch
      %20 = sbr.rel target = $region3
    $region8: #{set_aggregator_forward.1} parent=1 // loop_exit
      _
    %1075 = vsyncpa [#allocation4], 1
    %s1076 = scalar_lea.sflag [#allocation4], 1
    %1077 = vsyncpa %s1076, 1

</llo_original>
